<compile_context>
chip_gen: v5e
topology: v5e:2x2
jax: 0.10.0
libtpu: 0.0.40
codegen_flags: <defaults>
</compile_context>

<pallas_src>
import math

import jax
import jax.numpy as jnp
from jax.experimental import pallas as pl
from jax.experimental.pallas import tpu as pltpu


def _round_up(v, m):
    return ((v + m - 1) // m) * m


def _gcn_kernel(x_ref, w_ref, adj_ref, b_ref, o_ref, acc_ref):
    """One (row-tile i, k-tile) step of  out = adj @ (x @ W) + b."""
    k = pl.program_id(1)

    @pl.when(k == 0)
    def _():
        acc_ref[...] = jnp.zeros_like(acc_ref)

    # Fused feature transform for this k-slab of nodes (tiny: TK x F_in x F_out).
    support = jnp.dot(
        x_ref[...], w_ref[...], preferred_element_type=jnp.float32
    ).astype(x_ref.dtype)

    # Aggregation: acc += adj[i, k] @ support[k]   (MXU, f32 accumulation)
    acc_ref[...] += jnp.dot(
        adj_ref[...], support, preferred_element_type=jnp.float32
    )

    @pl.when(k == pl.num_programs(1) - 1)
    def _():
        # Bias add kept in f32 (avoids bf16 VPU epilogue math on v5e).
        o_ref[...] = (acc_ref[...] + b_ref[...]).astype(o_ref.dtype)


def graph_convolution(
    x,
    adj,
    weight,
    bias=None,
    *,
    tm=256,               # row tile (multiple of 8; 128-aligned for v5e MXU granule)
    tk=512,               # contraction tile (multiple of 128)
    compute_dtype=None,   # e.g. jnp.bfloat16 on v6e/v7x; default = input dtype (f32)
    vmem_limit_bytes=48 * 1024 * 1024,
):
    """x: (N, F_in), adj: (N, N) dense, weight: (F_in, F_out), bias: (F_out,) or None."""
    n, f_in = x.shape
    f_in_w, f_out = weight.shape
    assert f_in_w == f_in and adj.shape == (n, n)

    out_dtype = x.dtype
    cdt = jnp.dtype(compute_dtype) if compute_dtype is not None else jnp.dtype(x.dtype)

    # ---- tile sizes & padded shapes (8/128 tiling rules, lane-dense output) ----
    tm = min(tm, _round_up(n, 8))       # sublane dim of adj/out blocks
    tk = min(tk, _round_up(n, 128))     # lane dim of adj block / sublane of x block
    n_rows = _round_up(n, tm)
    n_cols = _round_up(n, tk)
    f_in_p = _round_up(f_in, 8)
    f_out_p = _round_up(f_out, 128)     # lane-dense stores for the output slab

    # ---- pad + cast (zero padding keeps the math exact) ----
    x_p = jnp.pad(x, ((0, n_cols - n), (0, f_in_p - f_in))).astype(cdt)
    adj_p = jnp.pad(adj, ((0, n_rows - n), (0, n_cols - n))).astype(cdt)
    w_p = jnp.pad(weight, ((0, f_in_p - f_in), (0, f_out_p - f_out))).astype(cdt)
    if bias is None:
        b_p = jnp.zeros((1, f_out_p), jnp.float32)
    else:
        b_p = jnp.pad(
            bias.reshape(1, f_out).astype(jnp.float32),
            ((0, 0), (0, f_out_p - f_out)),
        )

    grid = (n_rows // tm, n_cols // tk)

    flops = 2.0 * n * n * f_out + 2.0 * n * f_in * f_out
    bytes_accessed = (
        (adj_p.size + x_p.size + w_p.size) * cdt.itemsize
        + n_rows * f_out_p * jnp.dtype(out_dtype).itemsize
    )
    cost = pl.CostEstimate(
        flops=int(flops), transcendentals=0, bytes_accessed=int(bytes_accessed)
    )

    out_p = pl.pallas_call(
        _gcn_kernel,
        out_shape=jax.ShapeDtypeStruct((n_rows, f_out_p), out_dtype),
        grid_spec=pltpu.PrefetchScalarGridSpec(
            num_scalar_prefetch=0,
            grid=grid,
            in_specs=[
                pl.BlockSpec((tk, f_in_p), lambda i, k: (k, 0)),       # x slab (streamed over k)
                pl.BlockSpec((f_in_p, f_out_p), lambda i, k: (0, 0)),  # weight (VMEM resident)
                pl.BlockSpec((tm, tk), lambda i, k: (i, k)),           # adj tile (streamed)
                pl.BlockSpec((1, f_out_p), lambda i, k: (0, 0)),       # bias (VMEM resident)
            ],
            out_specs=pl.BlockSpec((tm, f_out_p), lambda i, k: (i, 0)),
            scratch_shapes=[pltpu.VMEM((tm, f_out_p), jnp.float32)],
        ),
        compiler_params=pltpu.CompilerParams(
            dimension_semantics=("parallel", "arbitrary"),
            vmem_limit_bytes=vmem_limit_bytes,
        ),
        cost_estimate=cost,
    )(x_p, w_p, adj_p, b_p)

    return out_p[:n, :f_out]


if __name__ == "__main__":
    # Small deterministic example consistent with the module's forward:
    #   N graph nodes, in_features -> out_features.
    N, F_IN, F_OUT = 16, 8, 32

    key = jax.random.PRNGKey(0)
    k_x, k_adj, k_w, k_b = jax.random.split(key, 4)

    x = jax.random.normal(k_x, (N, F_IN), dtype=jnp.float32)
    adj_raw = jax.random.uniform(k_adj, (N, N), dtype=jnp.float32)
    adj = adj_raw / jnp.sum(adj_raw, axis=1, keepdims=True)

    # Parameter init mirrors reset_parameters(): uniform(-stdv, stdv),
    # stdv = 1 / sqrt(out_features).
    stdv = 1.0 / math.sqrt(F_OUT)
    weight = jax.random.uniform(
        k_w, (F_IN, F_OUT), minval=-stdv, maxval=stdv, dtype=jnp.float32
    )
    bias = jax.random.uniform(
        k_b, (F_OUT,), minval=-stdv, maxval=stdv, dtype=jnp.float32
    )

    ref = adj @ (x @ weight) + bias

    # f32 path (matches the PyTorch module's numerics).
    out = jax.block_until_ready(graph_convolution(x, adj, weight, bias))
    assert out.shape == (N, F_OUT)
    assert jnp.allclose(out, ref, atol=1e-5, rtol=1e-5)

    # bf16 MXU-input path (v6e/v7x bandwidth optimization), f32 accumulation.
    out_bf16 = jax.block_until_ready(
        graph_convolution(x, adj, weight, bias, compute_dtype=jnp.bfloat16)
    )
    assert jnp.allclose(out_bf16, ref, atol=5e-2, rtol=5e-2)

    print("KERNEL_OK")
</pallas_src>

<mosaic_0001>
module attributes {stable_mosaic.version = 11 : i64} {
  func.func @_gcn_kernel(%arg0: i32, %arg1: i32, %arg2: memref<128x8xf32, #tpu.memory_space<vmem>>, %arg3: memref<8x128xf32, #tpu.memory_space<vmem>>, %arg4: memref<16x128xf32, #tpu.memory_space<vmem>>, %arg5: memref<1x128xf32, #tpu.memory_space<vmem>>, %arg6: memref<16x128xf32, #tpu.memory_space<vmem>>, %arg7: memref<16x128xf32, #tpu.memory_space<vmem>>) attributes {dimension_semantics = [#tpu.dimension_semantics<parallel>, #tpu.dimension_semantics<arbitrary>], iteration_bounds = array<i64: 1, 1>, scalar_prefetch = 0 : i64, scratch_operands = 1 : i64, tpu.core_type = #tpu.core_type<tc>, window_params = [{transform_indices = @transform_0, window_bounds = array<i64: 128, 8>}, {pipeline_mode = #tpu.pipeline_mode<synchronous>, transform_indices = @transform_1, window_bounds = array<i64: 8, 128>}, {transform_indices = @transform_2, window_bounds = array<i64: 16, 128>}, {pipeline_mode = #tpu.pipeline_mode<synchronous>, transform_indices = @transform_3, window_bounds = array<i64: 1, 128>}, {transform_indices = @transform_4, window_bounds = array<i64: 16, 128>}]} {
    %c0_i32 = arith.constant 0 : i32
    %0 = arith.cmpi eq, %arg1, %c0_i32 : i32
    %1 = arith.extui %0 : i1 to i32
    %c0_i32_0 = arith.constant 0 : i32
    %2 = arith.cmpi ne, %1, %c0_i32_0 : i32
    scf.if %2 {
      %cst_13 = arith.constant 0.000000e+00 : f32
      %14 = vector.broadcast %cst_13 : f32 to vector<16x128xf32>
      %c0_14 = arith.constant 0 : index
      %c0_15 = arith.constant 0 : index
      %15 = vector.load %arg7[%c0_14, %c0_15] : memref<16x128xf32, #tpu.memory_space<vmem>>, vector<16x128xf32>
      tpu.vector_store %arg7[%c0_14, %c0_15], %14 {strides = array<i32>} : memref<16x128xf32, #tpu.memory_space<vmem>>, vector<16x128xf32>,
    } else {
    }
    %c0 = arith.constant 0 : index
    %c0_1 = arith.constant 0 : index
    %3 = vector.load %arg2[%c0, %c0_1] : memref<128x8xf32, #tpu.memory_space<vmem>>, vector<128x8xf32>
    %c0_2 = arith.constant 0 : index
    %c0_3 = arith.constant 0 : index
    %4 = vector.load %arg3[%c0_2, %c0_3] : memref<8x128xf32, #tpu.memory_space<vmem>>, vector<8x128xf32>
    %cst = arith.constant dense<0.000000e+00> : vector<128x128xf32>
    %5 = tpu.matmul %3, %4, %cst {dimension_numbers = #tpu.dot_dimension_numbers<[1], [0], [0], [1], [0, 0, 1, 1], [], []>} : vector<128x8xf32>, vector<8x128xf32>, vector<128x128xf32> -> vector<128x128xf32>
    %c0_4 = arith.constant 0 : index
    %c0_5 = arith.constant 0 : index
    %6 = vector.load %arg7[%c0_4, %c0_5] : memref<16x128xf32, #tpu.memory_space<vmem>>, vector<16x128xf32>
    %c0_6 = arith.constant 0 : index
    %c0_7 = arith.constant 0 : index
    %7 = vector.load %arg4[%c0_6, %c0_7] : memref<16x128xf32, #tpu.memory_space<vmem>>, vector<16x128xf32>
    %cst_8 = arith.constant dense<0.000000e+00> : vector<16x128xf32>
    %8 = tpu.matmul %7, %5, %cst_8 {dimension_numbers = #tpu.dot_dimension_numbers<[1], [0], [0], [1], [0, 0, 1, 1], [], []>} : vector<16x128xf32>, vector<128x128xf32>, vector<16x128xf32> -> vector<16x128xf32>
    %9 = arith.addf %6, %8 : vector<16x128xf32>
    %c0_9 = arith.constant 0 : index
    %c0_10 = arith.constant 0 : index
    %10 = vector.load %arg7[%c0_9, %c0_10] : memref<16x128xf32, #tpu.memory_space<vmem>>, vector<16x128xf32>
    tpu.vector_store %arg7[%c0_9, %c0_10], %9 {strides = array<i32>} : memref<16x128xf32, #tpu.memory_space<vmem>>, vector<16x128xf32>,
    %c0_i32_11 = arith.constant 0 : i32
    %11 = arith.cmpi eq, %arg1, %c0_i32_11 : i32
    %12 = arith.extui %11 : i1 to i32
    %c0_i32_12 = arith.constant 0 : i32
    %13 = arith.cmpi ne, %12, %c0_i32_12 : i32
    scf.if %13 {
      %c0_13 = arith.constant 0 : index
      %c0_14 = arith.constant 0 : index
      %14 = vector.load %arg7[%c0_13, %c0_14] : memref<16x128xf32, #tpu.memory_space<vmem>>, vector<16x128xf32>
      %c0_15 = arith.constant 0 : index
      %c0_16 = arith.constant 0 : index
      %15 = vector.load %arg5[%c0_15, %c0_16] : memref<1x128xf32, #tpu.memory_space<vmem>>, vector<1x128xf32>
      %16 = vector.broadcast %15 : vector<1x128xf32> to vector<16x128xf32>
      %17 = arith.addf %14, %16 : vector<16x128xf32>
      %c0_17 = arith.constant 0 : index
      %c0_18 = arith.constant 0 : index
      %18 = vector.load %arg6[%c0_17, %c0_18] : memref<16x128xf32, #tpu.memory_space<vmem>>, vector<16x128xf32>
      tpu.vector_store %arg6[%c0_17, %c0_18], %17 {strides = array<i32>} : memref<16x128xf32, #tpu.memory_space<vmem>>, vector<16x128xf32>,
    } else {
    }
    return
  }
  func.func @transform_0(%arg0: i32, %arg1: i32) -> (i32, i32) {
    %c0_i32 = arith.constant 0 : i32
    %c0_i32_0 = arith.constant 0 : i32
    return %arg1, %c0_i32 : i32, i32
  }
  func.func @transform_1(%arg0: i32, %arg1: i32) -> (i32, i32) {
    %c0_i32 = arith.constant 0 : i32
    %c0_i32_0 = arith.constant 0 : i32
    %c0_i32_1 = arith.constant 0 : i32
    return %c0_i32, %c0_i32_0 : i32, i32
  }
  func.func @transform_2(%arg0: i32, %arg1: i32) -> (i32, i32) {
    %c0_i32 = arith.constant 0 : i32
    return %arg0, %arg1 : i32, i32
  }
  func.func @transform_3(%arg0: i32, %arg1: i32) -> (i32, i32) {
    %c0_i32 = arith.constant 0 : i32
    %c0_i32_0 = arith.constant 0 : i32
    %c0_i32_1 = arith.constant 0 : i32
    return %c0_i32, %c0_i32_0 : i32, i32
  }
  func.func @transform_4(%arg0: i32, %arg1: i32) -> (i32, i32) {
    %c0_i32 = arith.constant 0 : i32
    %c0_i32_0 = arith.constant 0 : i32
    return %arg0, %c0_i32 : i32, i32
  }
}

</mosaic_0001>

<llo_original>
// kernel: tpu_custom_call.1
$region0: #{tpu_custom_call.1}
  #allocation0 [shape = 'u32[]', space=smem, size = 0x4, offset = 0x4, fixed_abs, tag = 'smem constant byte address 0x4 - core index']
  #allocation1 [shape = 'u32[72,128]{1,0:T(1,128)}', space=vmem, size = 0x9000, scoped, tag = 'internal scratch']
  #allocation2 [shape = 'f32[16,128]{1,0:T(8,128)}', space=vmem, size = 0x2000, scoped, tag = 'scratch operand']
  %s0 = inlined_call_operand.vmem [shape: f32[128,8], index: 0, kind: input, shape index: {}]
  %s1 = inlined_call_operand.vmem [shape: f32[8,128], index: 1, kind: input, shape index: {}]
  %s2 = inlined_call_operand.vmem [shape: f32[16,128], index: 2, kind: input, shape index: {}]
  %s3 = inlined_call_operand.vmem [shape: f32[1,128], index: 3, kind: input, shape index: {}]
  %s4 = inlined_call_operand.hbm [shape: f32[16,128], index: 4, kind: output, shape index: {}]
  %s5 = sld [smem:[#allocation0]]
  $region34: #{tpu_custom_call.1} parent=0
    _
  %s7 = ssub.s32 1, %s5
  %s8 = scalar_select 0, %s7, %s5
  $region1: #{tpu_custom_call.1} parent=0
    #allocation3 [shape = 'u8[8192]{0}', space=vmem, size = 0x2000, scoped, tag = 'output window, operand 0, single buffered']
    #allocation4 [shape = 's32[1]{0}', space=sflag, size = 0x4, scoped, tag = 'scoped memory for tpu_custom_call.1']
    %9 = vsyncpa [#allocation4], 0
    // Predicated region
    $region2: #{tpu_custom_call.1} parent=1 // pred_check
      _
    $region3: #{tpu_custom_call.1} parent=1 // pred_check_branch
      %11 = sbr.rel (0) target = $region5
    $region4: #{tpu_custom_call.1} parent=1 // pred_region
      _
    $region5: #{tpu_custom_call.1} parent=1 // pred_fallthru
      _
    // Predicated region
    $region6: #{tpu_custom_call.1} parent=1 // pred_check
      _
    $region7: #{tpu_custom_call.1} parent=1 // pred_check_branch
      %13 = sbr.rel (0) target = $region9
    $region8: #{tpu_custom_call.1} parent=1 // pred_region
      _
    $region9: #{tpu_custom_call.1} parent=1 // pred_fallthru
      _
    // Predicated region
    $region10: #{tpu_custom_call.1} parent=1 // pred_check
      _
    $region11: #{tpu_custom_call.1} parent=1 // pred_check_branch
      %15 = sbr.rel (0) target = $region13
    $region12: #{tpu_custom_call.1} parent=1 // pred_region
      _
    $region13: #{tpu_custom_call.1} parent=1 // pred_fallthru
      _
    // Predicated region
    $region14: #{tpu_custom_call.1} parent=1 // pred_check
      _
    $region15: #{tpu_custom_call.1} parent=1 // pred_check_branch
      %17 = sbr.rel (0) target = $region17
    $region16: #{tpu_custom_call.1} parent=1 // pred_region
      _
    $region17: #{tpu_custom_call.1} parent=1 // pred_fallthru
      _
    %p18 = scmp.eq.s32.totalorder 0, 0
    // Predicated region
    $region18: #{tpu_custom_call.1} parent=1 // pred_check
      %p19 = pneg %p18
    $region19: #{tpu_custom_call.1} parent=1 // pred_check_branch
      %21 = sbr.rel (%p19) target = $region21
    $region20: #{tpu_custom_call.1} parent=1 // pred_region
      %22 = vst [vmem:[#allocation2] sm:$0xff] 0.0
      %23 = vst [vmem:[#allocation2 + $0x8] sm:$0xff] 0.0
    $region21: #{tpu_custom_call.1} parent=1 // pred_fallthru
      _
    %v24 = vld [vmem:[%s0] sm:$0xff]
    %v25 = vld [vmem:[%s0 + $0x8] sm:$0xff]
    %v26 = vld [vmem:[%s0 + $0x10] sm:$0xff]
    %v27 = vld [vmem:[%s0 + $0x18] sm:$0xff]
    %v28 = vld [vmem:[%s0 + $0x20] sm:$0xff]
    %v29 = vld [vmem:[%s0 + $0x28] sm:$0xff]
    %v30 = vld [vmem:[%s0 + $0x30] sm:$0xff]
    %v31 = vld [vmem:[%s0 + $0x38] sm:$0xff]
    %v32 = vld [vmem:[%s0 + $0x40] sm:$0xff]
    %v33 = vld [vmem:[%s0 + $0x48] sm:$0xff]
    %v34 = vld [vmem:[%s0 + $0x50] sm:$0xff]
    %v35 = vld [vmem:[%s0 + $0x58] sm:$0xff]
    %v36 = vld [vmem:[%s0 + $0x60] sm:$0xff]
    %v37 = vld [vmem:[%s0 + $0x68] sm:$0xff]
    %v38 = vld [vmem:[%s0 + $0x70] sm:$0xff]
    %v39 = vld [vmem:[%s0 + $0x78] sm:$0xff]
    %v40 = vld [vmem:[%s1] sm:$0xff]
    %vm41 = vcmask 64512
    %v43 = vsel %vm41, %v24, 0
    %v46 = vsel %vm41, %v25, 0
    %v49 = vsel %vm41, %v26, 0
    %v52 = vsel %vm41, %v27, 0
    %v55 = vsel %vm41, %v28, 0
    %v58 = vsel %vm41, %v29, 0
    %v61 = vsel %vm41, %v30, 0
    %v64 = vsel %vm41, %v31, 0
    %v67 = vsel %vm41, %v32, 0
    %v70 = vsel %vm41, %v33, 0
    %v73 = vsel %vm41, %v34, 0
    %v76 = vsel %vm41, %v35, 0
    %v79 = vsel %vm41, %v36, 0
    %v82 = vsel %vm41, %v37, 0
    %v85 = vsel %vm41, %v38, 0
    %v88 = vsel %vm41, %v39, 0
    %90 = vmatpush.msra.mxu0 0.0
    %91 = vmatpush.msra.mxu0 0.0
    %92 = vmatpush.msra.mxu0 0.0
    %93 = vmatpush.msra.mxu0 0.0
    %94 = vmatpush.msra.mxu0 0.0
    %95 = vmatpush.msra.mxu0 0.0
    %96 = vmatpush.msra.mxu0 0.0
    %97 = vmatpush.msra.mxu0 0.0
    %98 = vmatpush.msra.mxu0 0.0
    %99 = vmatpush.msra.mxu0 0.0
    %100 = vmatpush.msra.mxu0 0.0
    %101 = vmatpush.msra.mxu0 0.0
    %102 = vmatpush.msra.mxu0 0.0
    %103 = vmatpush.msra.mxu0 0.0
    %104 = vmatpush.msra.mxu0 0.0
    %105 = vmatpush.msra.mxu0 %v40
    %106 = vmatmul.f32.gmra.mxu0 %v43
    %v107 = vpop.f32.mrf.mxu0
    %v108 = vadd.f32 0.0, %v107
    %109 = vmatmul.f32.gmra.mxu0 %v46
    %v110 = vpop.f32.mrf.mxu0
    %v111 = vadd.f32 0.0, %v110
    %112 = vmatmul.f32.gmra.mxu0 %v49
    %v113 = vpop.f32.mrf.mxu0
    %v114 = vadd.f32 0.0, %v113
    %115 = vmatmul.f32.gmra.mxu0 %v52
    %v116 = vpop.f32.mrf.mxu0
    %v117 = vadd.f32 0.0, %v116
    %118 = vmatmul.f32.gmra.mxu0 %v55
    %v119 = vpop.f32.mrf.mxu0
    %v120 = vadd.f32 0.0, %v119
    %121 = vmatmul.f32.gmra.mxu0 %v58
    %v122 = vpop.f32.mrf.mxu0
    %v123 = vadd.f32 0.0, %v122
    %124 = vmatmul.f32.gmra.mxu0 %v61
    %v125 = vpop.f32.mrf.mxu0
    %v126 = vadd.f32 0.0, %v125
    %127 = vmatmul.f32.gmra.mxu0 %v64
    %v128 = vpop.f32.mrf.mxu0
    %v129 = vadd.f32 0.0, %v128
    %130 = vmatmul.f32.gmra.mxu0 %v67
    %v131 = vpop.f32.mrf.mxu0
    %v132 = vadd.f32 0.0, %v131
    %133 = vmatmul.f32.gmra.mxu0 %v70
    %v134 = vpop.f32.mrf.mxu0
    %v135 = vadd.f32 0.0, %v134
    %136 = vmatmul.f32.gmra.mxu0 %v73
    %v137 = vpop.f32.mrf.mxu0
    %v138 = vadd.f32 0.0, %v137
    %139 = vmatmul.f32.gmra.mxu0 %v76
    %v140 = vpop.f32.mrf.mxu0
    %v141 = vadd.f32 0.0, %v140
    %142 = vmatmul.f32.gmra.mxu0 %v79
    %v143 = vpop.f32.mrf.mxu0
    %v144 = vadd.f32 0.0, %v143
    %145 = vmatmul.f32.gmra.mxu0 %v82
    %v146 = vpop.f32.mrf.mxu0
    %v147 = vadd.f32 0.0, %v146
    %148 = vmatmul.f32.gmra.mxu0 %v85
    %v149 = vpop.f32.mrf.mxu0
    %v150 = vadd.f32 0.0, %v149
    %151 = vmatmul.f32.gmra.mxu0 %v88
    %v152 = vpop.f32.mrf.mxu0
    %v153 = vadd.f32 0.0, %v152
    %154 = vdwg.mxu0
    %v155 = vld [vmem:[#allocation2] sm:$0xff]
    %v156 = vld [vmem:[#allocation2 + $0x8] sm:$0xff]
    %v157 = vld [vmem:[%s2] sm:$0xff]
    %v158 = vld [vmem:[%s2 + $0x8] sm:$0xff]
    %159 = vmatpush.msra.mxu0 %v153
    %160 = vmatpush.msra.mxu0 %v150
    %161 = vmatpush.msra.mxu0 %v147
    %162 = vmatpush.msra.mxu0 %v144
    %163 = vmatpush.msra.mxu0 %v141
    %164 = vmatpush.msra.mxu0 %v138
    %165 = vmatpush.msra.mxu0 %v135
    %166 = vmatpush.msra.mxu0 %v132
    %167 = vmatpush.msra.mxu0 %v129
    %168 = vmatpush.msra.mxu0 %v126
    %169 = vmatpush.msra.mxu0 %v123
    %170 = vmatpush.msra.mxu0 %v120
    %171 = vmatpush.msra.mxu0 %v117
    %172 = vmatpush.msra.mxu0 %v114
    %173 = vmatpush.msra.mxu0 %v111
    %174 = vmatpush.msra.mxu0 %v108
    %175 = vmatmul.f32.gmra.mxu0 %v157
    %v176 = vpop.f32.mrf.mxu0
    %v177 = vadd.f32 0.0, %v176
    %178 = vmatmul.f32.gmra.mxu0 %v158
    %v179 = vpop.f32.mrf.mxu0
    %v180 = vadd.f32 0.0, %v179
    %181 = vdwg.mxu0
    %v182 = vadd.f32 %v155, %v177
    %v183 = vadd.f32 %v156, %v180
    %184 = vst [vmem:[#allocation2] sm:$0xff] %v182
    %185 = vst [vmem:[#allocation2 + $0x8] sm:$0xff] %v183
    // Predicated region
    $region22: #{tpu_custom_call.1} parent=1 // pred_check
      %p186 = pneg %p18
    $region23: #{tpu_custom_call.1} parent=1 // pred_check_branch
      %188 = sbr.rel (%p186) target = $region25
    $region24: #{tpu_custom_call.1} parent=1 // pred_region
      %v189 = vld [vmem:[#allocation2] sm:$0xff]
      %v190 = vld [vmem:[#allocation2 + $0x8] sm:$0xff]
      %v191 = vld [vmem:[%s3] sm:$0x1]
      %v193 = vperm.slane %v191, 0
      %v195 = vadd.f32 %v189, %v193
      %v196 = vadd.f32 %v190, %v193
      %197 = vst [vmem:[#allocation3] sm:$0xff] %v195
      %198 = vst [vmem:[#allocation3 + $0x8] sm:$0xff] %v196
    $region25: #{tpu_custom_call.1} parent=1 // pred_fallthru
      _
    // Predicated region
    $region26: #{tpu_custom_call.1} parent=1 // pred_check
      _
    $region27: #{tpu_custom_call.1} parent=1 // pred_check_branch
      %200 = sbr.rel (0) target = $region29
    $region28: #{tpu_custom_call.1} parent=1 // pred_region
      %202 = vsyncadd [#allocation4], 0
      %s203 = sshll.u32 [#allocation3], 4
      %s204 = int_to_ptr.vmem [resolvable:$true] %s203
      %s205 = sshll.u32 %s4, 4
      %s206 = int_to_ptr.hbm [resolvable:$true] %s205
      %211 = dma.vmem_to_hbm [thread:$0]  %s204, 256, %s206, [#allocation4], 128, 128, 8
    $region29: #{tpu_custom_call.1} parent=1 // pred_fallthru
      _
    // Predicated region
    $region30: #{tpu_custom_call.1} parent=1 // pred_check
      _
    $region31: #{tpu_custom_call.1} parent=1 // pred_check_branch
      %213 = sbr.rel (0) target = $region33
    $region32: #{tpu_custom_call.1} parent=1 // pred_region
      %215 = dma.done [#allocation4], 256
    $region33: #{tpu_custom_call.1} parent=1 // pred_fallthru
      _
    %216 = vsyncpa [#allocation4], 1

</llo_original>
